<compile_context>
chip_gen: v7x
topology: tpu7x:2x2x1
jax: 0.10.0
libtpu: 0.0.40
codegen_flags: <defaults>
</compile_context>

<pallas_src>
import jax
import jax.numpy as jnp
from jax.experimental import pallas as pl
from jax.experimental.pallas import tpu as pltpu


_LANES = (1024, 512, 256, 128)     # lane-dense widths (all multiples of 128)
_TARGET_BLOCK_BYTES = 4 << 20      # ~4 MiB blocks: per-step overhead <5% even at v7x HBM BW
_MIN_BLOCK_BYTES = 1 << 20         # never shrink tiles below ~1 MiB to chase divisibility
_VMEM_LIMIT_BYTES = 32 << 20       # 3 in-bufs + 2 out-bufs @ 4 MiB ~= 20 MiB + headroom;
                                   # explicit so v5e's 16 MiB scoped default doesn't bite,
                                   # and comfortably inside v7x's 64 MiB physical VMEM.
_XLA_FASTPATH_BYTES = 8 << 20      # below this, XLA's fused maximum is strictly better


def _guided_relu_kernel(x_ref, o_ref):
    # Single VPU op per element; forward of GuidedBackPropReLU == ReLU.
    # (jnp.maximum(x, 0) vs x*(x>0) differ only in the sign of zero for -0.0.)
    o_ref[...] = jnp.maximum(x_ref[...], 0)


def _sublane(itemsize: int) -> int:
    # Sublane-packing granularity per dtype width.
    return 8 if itemsize >= 4 else (16 if itemsize == 2 else 32)


def _pick_tile_rows(rows: int, lane: int, itemsize: int) -> int:
    """Pick a row-tile in [~1 MiB, ~4 MiB], preferring an even grid (v7x
    megacore), then an exact divisor of `rows`, then a larger tile."""
    sub = _sublane(itemsize)
    row_bytes = lane * itemsize
    target = max(sub, (_TARGET_BLOCK_BYTES // row_bytes) // sub * sub)
    floor = max(sub, (_MIN_BLOCK_BYTES // row_bytes) // sub * sub)
    hi = max(sub, min(target, rows) // sub * sub)
    lo = min(floor, hi)

    best_t, best_score = None, None
    for t in range(hi, lo - 1, -sub):
        g = -(-rows // t)                      # cdiv
        score = (g % 2 == 0, rows % t == 0, t)  # even grid > exact divisor > bigger tile
        if best_score is None or score > best_score:
            best_t, best_score = t, score
    return best_t


def _choose_layout(total: int, itemsize: int):
    """Return (lane, tile_rows, rows) for a pad-free lane-dense 2-D slab
    covering the WHOLE tensor, or None if `total` isn't 128*sublane aligned."""
    sub = _sublane(itemsize)
    for lane in _LANES:
        if total % lane:
            continue
        rows = total // lane
        if rows % sub:
            continue  # keep array rows sublane-aligned; a narrower lane may work
        return lane, _pick_tile_rows(rows, lane, itemsize), rows
    return None


def _run_relu_slab(x2d: jax.Array, tile_rows: int, lane: int,
                   donate_input: bool = False) -> jax.Array:
    rows = x2d.shape[0]
    grid = (pl.cdiv(rows, tile_rows),)
    index_map = lambda i: (i, 0)

    out_spec = pl.BlockSpec((tile_rows, lane), index_map)
    in_spec = pl.BlockSpec((tile_rows, lane), index_map)
    if grid[0] >= 3:
        # Compute per step is a single VPU max, so the loop is pure DMA; a
        # third input buffer hides DMA issue latency (cheap: +1 tile of VMEM).
        try:
            in_spec = pl.BlockSpec((tile_rows, lane), index_map,
                                   pipeline_mode=pl.Buffered(3))
        except (TypeError, AttributeError):
            pass  # older JAX without pipeline_mode: default double-buffering

    itemsize = jnp.dtype(x2d.dtype).itemsize
    return pl.pallas_call(
        _guided_relu_kernel,
        out_shape=jax.ShapeDtypeStruct(x2d.shape, x2d.dtype),
        grid_spec=pltpu.PrefetchScalarGridSpec(
            num_scalar_prefetch=0,
            grid=grid,
            in_specs=[in_spec],
            out_specs=out_spec,
        ),
        compiler_params=pltpu.CompilerParams(
            dimension_semantics=("parallel",),   # shardable across v7x's 2 TCs
            vmem_limit_bytes=_VMEM_LIMIT_BYTES,
        ),
        cost_estimate=pl.CostEstimate(
            flops=x2d.size,
            transcendentals=0,
            bytes_accessed=2 * x2d.size * itemsize,
        ),
        input_output_aliases=({0: 0} if donate_input else {}),
    )(x2d)


def guided_backprop_relu_forward(x: jax.Array, *, force_kernel: bool = False,
                                 donate_input: bool = False) -> jax.Array:
    """Forward of GuidedBackPropReLU (== ReLU) for an arbitrary-shape tensor."""
    orig_shape = x.shape
    dtype = x.dtype
    total = x.size
    if total == 0:
        return x
    itemsize = jnp.dtype(dtype).itemsize

    # Fast path: XLA's fused maximum already runs at the HBM roofline and
    # fuses with producers/consumers; the Pallas call only pays off for large,
    # aligned activations (or once the guided backward mask is fused into it).
    if not force_kernel and total * itemsize < _XLA_FASTPATH_BYTES:
        return jnp.maximum(x, 0)

    x_flat = x.reshape(-1)
    layout = _choose_layout(total, itemsize)

    if layout is not None:
        # Pad-free path: one pallas_call over the whole tensor (2N HBM bytes).
        lane, tile_rows, rows = layout
        out2d = _run_relu_slab(x_flat.reshape(rows, lane), tile_rows, lane,
                               donate_input=donate_input)
        return out2d.reshape(orig_shape)

    # Ragged fallback (total not a multiple of 128*sublane, rare for conv
    # activations): kernel on the largest 128-aligned prefix, tiny tail on the
    # VPU via XLA, one concat.  Replaces the old whole-tensor pad+slice.
    sub = _sublane(itemsize)
    chunk = 128 * sub
    bulk = (total // chunk) * chunk
    if bulk == 0 or not force_kernel:
        return jnp.maximum(x, 0)
    lane = 128
    rows = bulk // lane
    tile_rows = _pick_tile_rows(rows, lane, itemsize)
    out_bulk = _run_relu_slab(x_flat[:bulk].reshape(rows, lane), tile_rows, lane)
    out_tail = jnp.maximum(x_flat[bulk:], 0)
    return jnp.concatenate([out_bulk.reshape(-1), out_tail]).reshape(orig_shape)


# TODO(synk): the custom guided backward (grad_in = grad_out * (input > 0) *
# (grad_out > 0)) lives in autograd.Function.backward, not in the module's
# forward pass; only the forward (ReLU) is implemented here.  The real win is
# a custom_vjp whose backward fuses both masks into one elementwise kernel.


if __name__ == "__main__":
    key = jax.random.PRNGKey(0)
    k1, k2, k3 = jax.random.split(key, 3)

    # Small NCHW activation matching the module's conv-style input.
    x_small = jax.random.normal(k1, (2, 4, 16, 16), dtype=jnp.float32)
    out_small = jax.block_until_ready(
        guided_backprop_relu_forward(x_small, force_kernel=True))
    assert out_small.shape == x_small.shape and out_small.dtype == x_small.dtype
    assert jnp.allclose(out_small, jnp.maximum(x_small, 0.0)), "small mismatch"

    # Moderately sized activation hitting the pad-free lane-dense (rows, 1024) path.
    x_big = jax.random.normal(k2, (2, 8, 64, 64), dtype=jnp.float32)
    out_big = jax.block_until_ready(
        guided_backprop_relu_forward(x_big, force_kernel=True))
    assert jnp.allclose(out_big, jnp.maximum(x_big, 0.0)), "big mismatch"

    # Ragged element count (not a multiple of 128): exercises the bulk+tail split.
    x_odd = jax.random.normal(k3, (3, 5, 7, 11), dtype=jnp.float32)
    out_odd = jax.block_until_ready(
        guided_backprop_relu_forward(x_odd, force_kernel=True))
    assert out_odd.shape == x_odd.shape
    assert jnp.allclose(out_odd, jnp.maximum(x_odd, 0.0)), "odd mismatch"

    print("KERNEL_OK")
</pallas_src>

<mosaic_0001>
module attributes {stable_mosaic.version = 11 : i64} {
  func.func @_guided_relu_kernel(%arg0: i32, %arg1: memref<8x256xf32, #tpu.memory_space<vmem>>, %arg2: memref<8x256xf32, #tpu.memory_space<vmem>>) attributes {dimension_semantics = [#tpu.dimension_semantics<parallel>], iteration_bounds = array<i64: 1>, scalar_prefetch = 0 : i64, scratch_operands = 0 : i64, tpu.core_type = #tpu.core_type<tc>, window_params = [{transform_indices = @transform_0, window_bounds = array<i64: 8, 256>}, {transform_indices = @transform_1, window_bounds = array<i64: 8, 256>}]} {
    %c0 = arith.constant 0 : index
    %c0_0 = arith.constant 0 : index
    %0 = vector.load %arg1[%c0, %c0_0] : memref<8x256xf32, #tpu.memory_space<vmem>>, vector<8x256xf32>
    %cst = arith.constant 0.000000e+00 : f32
    %1 = vector.broadcast %cst : f32 to vector<8x256xf32>
    %2 = arith.maximumf %0, %1 : vector<8x256xf32>
    %c0_1 = arith.constant 0 : index
    %c0_2 = arith.constant 0 : index
    %3 = vector.load %arg2[%c0_1, %c0_2] : memref<8x256xf32, #tpu.memory_space<vmem>>, vector<8x256xf32>
    tpu.vector_store %arg2[%c0_1, %c0_2], %2 {strides = array<i32>} : memref<8x256xf32, #tpu.memory_space<vmem>>, vector<8x256xf32>,
    return
  }
  func.func @transform_0(%arg0: i32) -> (i32, i32) {
    %c0_i32 = arith.constant 0 : i32
    %c0_i32_0 = arith.constant 0 : i32
    return %arg0, %c0_i32 : i32, i32
  }
  func.func @transform_1(%arg0: i32) -> (i32, i32) {
    %c0_i32 = arith.constant 0 : i32
    %c0_i32_0 = arith.constant 0 : i32
    return %arg0, %c0_i32 : i32, i32
  }
}

</mosaic_0001>

<llo_original>
// kernel: tpu_custom_call.1
$region0: #{tpu_custom_call.1}
  #allocation0 [shape = 'u32[]', space=smem, size = 0x4, offset = 0x4, fixed_abs, tag = 'smem constant byte address 0x4 - core index']
  #allocation1 [shape = 'u32[144,128]{1,0:T(1,128)}', space=vmem, size = 0x12000, scoped, tag = 'internal scratch']
  %s0 = inlined_call_operand.hbm [shape: f32[8,256], index: 0, kind: input, shape index: {}]
  %s1 = inlined_call_operand.hbm [shape: f32[8,256], index: 1, kind: output, shape index: {}]
  %s2 = sld [smem:[#allocation0]]
  $region18: #{tpu_custom_call.1} parent=0
    _
  %s4 = ssub.s32 1, %s2
  %s5 = scalar_select 0, %s4, %s2
  $region1: #{tpu_custom_call.1} parent=0
    #allocation2 [shape = 'u8[8192]{0}', space=vmem, size = 0x2000, scoped, tag = 'input window, operand 0, single buffered']
    #allocation3 [shape = 's32[1]{0}', space=sflag, size = 0x4, scoped, tag = 'scoped memory for tpu_custom_call.1']
    #allocation4 [shape = 's32[1]{0}', space=sflag, size = 0x4, scoped, tag = 'scoped memory for tpu_custom_call.1']
    #allocation5 [shape = 'u8[8192]{0}', space=vmem, size = 0x2000, scoped, tag = 'output window, operand 0, single buffered']
    %6 = vsyncpa [#allocation3], 0
    %7 = vsyncpa [#allocation4], 0
    // Predicated region
    $region2: #{tpu_custom_call.1} parent=1 // pred_check
      _
    $region3: #{tpu_custom_call.1} parent=1 // pred_check_branch
      %9 = sbr.rel (0) target = $region5
    $region4: #{tpu_custom_call.1} parent=1 // pred_region
      %s11 = ssub.s32 256, 256
      %12 = vsyncadd [#allocation3], %s11
      %s14 = sshll.u32 [#allocation2], 4
      %s15 = int_to_ptr.vmem [resolvable:$true] %s14
      %17 = dma.hbm_to_vmem [thread:$0]  %s0, 256, %s15, [#allocation3]
    $region5: #{tpu_custom_call.1} parent=1 // pred_fallthru
      _
    // Predicated region
    $region6: #{tpu_custom_call.1} parent=1 // pred_check
      _
    $region7: #{tpu_custom_call.1} parent=1 // pred_check_branch
      %19 = sbr.rel (0) target = $region9
    $region8: #{tpu_custom_call.1} parent=1 // pred_region
      %20 = dma.done [#allocation3], 256
    $region9: #{tpu_custom_call.1} parent=1 // pred_fallthru
      _
    %v21 = vld [vmem:[#allocation2] sm:$0xff]
    %v22 = vld [vmem:[#allocation2 + $0x8] sm:$0xff]
    %v23 = vmax.f32 %v21, 0.0
    %v24 = vmax.f32 %v22, 0.0
    %25 = vst [vmem:[#allocation5] sm:$0xff] %v23
    %26 = vst [vmem:[#allocation5 + $0x8] sm:$0xff] %v24
    // Predicated region
    $region10: #{tpu_custom_call.1} parent=1 // pred_check
      _
    $region11: #{tpu_custom_call.1} parent=1 // pred_check_branch
      %28 = sbr.rel (0) target = $region13
    $region12: #{tpu_custom_call.1} parent=1 // pred_region
      %s30 = ssub.s32 256, 256
      %31 = vsyncadd [#allocation4], %s30
      %s33 = sshll.u32 [#allocation5], 4
      %s34 = int_to_ptr.vmem [resolvable:$true] %s33
      %36 = dma.vmem_to_hbm [thread:$0]  %s34, 256, %s1, [#allocation4]
    $region13: #{tpu_custom_call.1} parent=1 // pred_fallthru
      _
    // Predicated region
    $region14: #{tpu_custom_call.1} parent=1 // pred_check
      _
    $region15: #{tpu_custom_call.1} parent=1 // pred_check_branch
      %38 = sbr.rel (0) target = $region17
    $region16: #{tpu_custom_call.1} parent=1 // pred_region
      %39 = dma.done [#allocation4], 256
    $region17: #{tpu_custom_call.1} parent=1 // pred_fallthru
      _
    %40 = vsyncpa [#allocation3], 1
    %41 = vsyncpa [#allocation4], 1

</llo_original>
